<compile_context>
chip_gen: v5e
topology: v5e:2x2
jax: 0.10.0
libtpu: 0.0.40
codegen_flags: <defaults>
</compile_context>

<pallas_src>
import functools
import math

import jax
import jax.numpy as jnp
from jax import lax
from jax.experimental import pallas as pl
from jax.experimental.pallas import tpu as pltpu


# ----------------------------- Pallas kernels ------------------------------


def _aggregate_weight_kernel(att_ref, wflat_ref, aggw_ref):
    # att  : (bs, K)    f32  (kept in f32 for accuracy of the softmax mix)
    # wflat: (K, nblk)  bf16 (streamed block of the flattened weight bank)
    # aggw : (bs, nblk) bf16 (bf16 writeback -> half the HBM store traffic)
    att = att_ref[...]
    w = wflat_ref[...].astype(jnp.float32)          # in-vreg cast; HBM stays bf16
    aggw_ref[...] = jnp.dot(
        att, w, preferred_element_type=jnp.float32).astype(aggw_ref.dtype)


def _dynconv_kernel(x_ref, w_ref, b_ref, o_ref, xpack_ref,
                    *, H, W, pad, ksize, cin, cout, row_tile):
    # x_ref    : (1, H, W, cin)               bf16
    # w_ref    : (1, ksize, ksize*cin, cout)  bf16  (kh, kw*cin-packed)
    # b_ref    : (1, 1, cout)                 f32
    # o_ref    : (1, H, W*cout)               f32   (lane-dense last dim)
    # xpack_ref: VMEM scratch (H+2p, W, ksize*cin) bf16:
    #            xpack[r, w, kw*cin + ci] == xpad[r, w + kw, ci]
    x = x_ref[0]                                          # (H, W, cin) bf16

    # --- build the kw-tap-packed, zero-padded activation once per sample ----
    # Only the pad border is zeroed (the interior is fully overwritten), and
    # each of the ksize image copies is written exactly once (vs the previous
    # 1 + ksize^2 image-sized copies per sample).  Re-zeroing the small border
    # every grid step keeps this correct under megacore scratch-per-core.
    if pad > 0:
        zrow = jnp.zeros((pad, W, ksize * cin), jnp.bfloat16)
        xpack_ref[pl.ds(0, pad)] = zrow                   # top pad rows
        xpack_ref[pl.ds(pad + H, pad)] = zrow             # bottom pad rows
    # TODO(synk): for cin a multiple of 128 these lane-offset writes are
    #             unmasked; with memory_space=pl.ANY the x image could be
    #             DMA'd straight into the scratch interior instead.
    for kw in range(ksize):                               # static unroll
        lane0 = kw * cin
        shift = kw - pad
        if shift == 0:
            xpack_ref[pl.ds(pad, H), :, pl.ds(lane0, cin)] = x
        elif shift < 0:
            s = -shift
            xpack_ref[pl.ds(pad, H), pl.ds(0, s), pl.ds(lane0, cin)] = (
                jnp.zeros((H, s, cin), jnp.bfloat16))
            xpack_ref[pl.ds(pad, H), pl.ds(s, W - s), pl.ds(lane0, cin)] = (
                x[:, :W - s, :])
        else:
            s = shift
            xpack_ref[pl.ds(pad, H), pl.ds(W - s, s), pl.ds(lane0, cin)] = (
                jnp.zeros((H, s, cin), jnp.bfloat16))
            xpack_ref[pl.ds(pad, H), pl.ds(0, W - s), pl.ds(lane0, cin)] = (
                x[:, s:, :])

    bias = b_ref[0]                                       # (1, cout) f32

    # --- row-tiled contraction: f32 accumulator stays <= ~32 vregs ----------
    def one_row_block(rb):
        r0 = rb * row_tile
        acc = jnp.zeros((row_tile * W, cout), jnp.float32)
        for kh in range(ksize):                           # ksize fat matmuls
            taps = xpack_ref[pl.ds(r0 + kh, row_tile), :, :]   # (rt, W, kk*cin)
            acc = acc + jnp.dot(
                taps.reshape(row_tile * W, ksize * cin),
                w_ref[0, kh],                              # (kk*cin, cout) bf16
                preferred_element_type=jnp.float32)
        out = acc + bias
        # Lane-dense store: last dim is W*cout (128-multiple for real shapes).
        o_ref[0, pl.ds(r0, row_tile), :] = (
            out.reshape(row_tile, W * cout).astype(o_ref.dtype))

    n_row_blocks = H // row_tile
    if n_row_blocks == 1:
        one_row_block(0)
    else:
        @pl.loop(0, n_row_blocks)
        def _(rb):
            one_row_block(rb)


# ----------------------------- wrapper / glue -------------------------------


def _choose_nblk(n, k_rows, bs, budget_bytes=4 * 1024 * 1024, lane=128):
    """Lane-aligned stage-1 block width from a VMEM budget (double-buffered
    bf16 (K, nblk) input block + bf16 (bs, nblk) output block)."""
    per_lane = 2 * 2 * (k_rows + bs)              # 2 buffers * 2 bytes * rows
    max_lanes = max(lane, budget_bytes // max(per_lane, 1))
    if n <= max_lanes:
        return n                                   # single full-width block
    return (max_lanes // lane) * lane              # cdiv grid handles the tail


def _choose_row_tile(H, W, cout, budget_elems=32 * 1024):
    """Output rows per accumulator tile so the f32 accumulator <= ~32 vregs."""
    rt = max(1, min(H, budget_elems // max(W * cout, 1)))
    while H % rt:
        rt -= 1
    return rt


def init_params(key, in_planes, out_planes, kernel_size, K, ratio):
    hidden = in_planes // ratio
    k1, k2, k3, k4 = jax.random.split(key, 4)
    attn_w1 = jax.random.normal(k1, (in_planes, hidden), jnp.float32) * math.sqrt(2.0 / in_planes)
    attn_w2 = jax.random.normal(k2, (hidden, K), jnp.float32) * math.sqrt(2.0 / hidden)
    fan_in = in_planes * kernel_size * kernel_size
    weight = jax.random.uniform(
        k3, (K, out_planes, in_planes, kernel_size, kernel_size),
        jnp.float32, -1.0, 1.0) * math.sqrt(3.0 / fan_in)            # ~kaiming_uniform
    weight_bf16 = weight.astype(jnp.bfloat16)                        # bf16 weight bank
    # Pre-transposed + flattened at init: (K, kh, kw, cin, cout) -> (K, N) so the
    # aggregated weight reshapes directly into the conv layout (no per-forward
    # transpose through HBM).
    weight_tap_flat = jnp.transpose(weight_bf16, (0, 3, 4, 2, 1)).reshape(K, -1)
    bias = jax.random.normal(k4, (K, out_planes), jnp.float32)
    return {"attn_w1": attn_w1, "attn_w2": attn_w2,
            "weight": weight_bf16, "weight_tap_flat": weight_tap_flat,
            "bias": bias}


def dynamic_conv_forward(params, x_nchw, *, kernel_size, padding, temprature, K):
    bs, cin, H, W = x_nchw.shape
    cout = params["bias"].shape[1]
    assert 2 * padding == kernel_size - 1, "only 'same'-size output (stride=1) supported"

    # ---- stage 0 (XLA): avg-pool + attention MLP + softmax + bias agg ------
    pooled = jnp.mean(x_nchw, axis=(2, 3))                           # (bs, cin)
    h = jax.nn.relu(pooled @ params["attn_w1"])
    att = jax.nn.softmax((h @ params["attn_w2"]) / temprature, axis=-1)  # (bs, K) f32
    aggb = (att @ params["bias"]).reshape(bs, 1, cout)               # (bs, 1, cout)
    x_nhwc = jnp.transpose(x_nchw, (0, 2, 3, 1)).astype(jnp.bfloat16)

    # ---- stage 1 (Pallas): weight-bank aggregation aggw = att @ W_flat -----
    wflat = params["weight_tap_flat"]                                # (K, N) bf16
    N = wflat.shape[1]
    nblk = _choose_nblk(N, K, bs)
    grid_n = pl.cdiv(N, nblk)                                        # masked tail block

    aggw_flat = pl.pallas_call(
        _aggregate_weight_kernel,
        grid=(grid_n,),
        in_specs=[
            pl.BlockSpec((bs, K), lambda n: (0, 0)),
            pl.BlockSpec((K, nblk), lambda n: (0, n)),
        ],
        out_specs=pl.BlockSpec((bs, nblk), lambda n: (0, n)),
        out_shape=jax.ShapeDtypeStruct((bs, N), jnp.bfloat16),       # bf16 writeback
        compiler_params=pltpu.CompilerParams(
            dimension_semantics=("parallel",)),                      # dual-TC on v7x
    )(att, wflat)

    # Per-sample conv weights already in tap-packed layout (bs, kk, kk*cin, cout).
    aggw = aggw_flat.reshape(bs, kernel_size, kernel_size * cin, cout)

    # ---- stage 2 (Pallas): per-sample conv, one grid step per sample -------
    # TODO(synk): pad cout to a 128-multiple and add an H-tile grid axis for
    #             dual-TC utilization on v7x when bs == 1.
    Hp = H + 2 * padding
    row_tile = _choose_row_tile(H, W, cout)

    stage2_vmem = (
        2 * H * W * cin * 2                                  # x blocks (bf16, dbl-buf)
        + 2 * kernel_size * kernel_size * cin * cout * 2     # weight blocks
        + 2 * cout * 4                                       # bias blocks
        + 2 * H * W * cout * 4                               # out blocks (f32, dbl-buf)
        + Hp * W * kernel_size * cin * 2)                    # xpack scratch
    vmem_limit = int(min(max(2 * stage2_vmem, 32 * 1024 * 1024), 120 * 1024 * 1024))

    out_flat = pl.pallas_call(
        functools.partial(_dynconv_kernel, H=H, W=W, pad=padding,
                          ksize=kernel_size, cin=cin, cout=cout,
                          row_tile=row_tile),
        grid=(bs,),
        in_specs=[
            pl.BlockSpec((1, H, W, cin), lambda b: (b, 0, 0, 0)),
            pl.BlockSpec((1, kernel_size, kernel_size * cin, cout),
                         lambda b: (b, 0, 0, 0)),
            pl.BlockSpec((1, 1, cout), lambda b: (b, 0, 0)),
        ],
        out_specs=pl.BlockSpec((1, H, W * cout), lambda b: (b, 0, 0)),
        out_shape=jax.ShapeDtypeStruct((bs, H, W * cout), jnp.float32),
        scratch_shapes=[pltpu.VMEM((Hp, W, kernel_size * cin), jnp.bfloat16)],
        compiler_params=pltpu.CompilerParams(
            dimension_semantics=("parallel",),
            vmem_limit_bytes=vmem_limit),
    )(x_nhwc, aggw, aggb)

    out_nhwc = out_flat.reshape(bs, H, W, cout)
    # TODO(synk): keep NHWC / bf16 output for downstream consumers to skip this
    #             transpose + f32 writeback (halves HBM traffic; matters on v7x).
    return jnp.transpose(out_nhwc, (0, 3, 1, 2))                     # back to NCHW


# ----------------------------- pure-JAX reference ---------------------------


def reference_forward(params, x_nchw, *, kernel_size, padding, temprature, K):
    bs, cin, H, W = x_nchw.shape
    cout = params["bias"].shape[1]
    pooled = x_nchw.mean(axis=(2, 3))
    h = jax.nn.relu(pooled @ params["attn_w1"])
    att = jax.nn.softmax((h @ params["attn_w2"]) / temprature, axis=-1)
    w_f32 = params["weight"].astype(jnp.float32)                     # (K,cout,cin,kk,kk)
    aggw = (att @ w_f32.reshape(K, -1)).reshape(
        bs, cout, cin, kernel_size, kernel_size)
    aggb = att @ params["bias"]

    def conv_one(xb, wb):
        return lax.conv_general_dilated(
            xb[None], wb, window_strides=(1, 1),
            padding=((padding, padding), (padding, padding)),
            dimension_numbers=("NCHW", "OIHW", "NCHW"))[0]

    out = jax.vmap(conv_one)(x_nchw, aggw)
    return out + aggb[:, :, None, None]


# ----------------------------------- main ------------------------------------


if __name__ == "__main__":
    bs, cin, cout, H, W = 2, 16, 16, 16, 16
    K, ratio, ksize, pad, T = 8, 4, 3, 1, 30

    key = jax.random.PRNGKey(0)
    kx, kp = jax.random.split(key)
    x = jax.random.normal(kx, (bs, cin, H, W), jnp.float32)
    params = init_params(kp, cin, cout, ksize, K, ratio)

    out = dynamic_conv_forward(params, x, kernel_size=ksize, padding=pad,
                               temprature=T, K=K)
    out = jax.block_until_ready(out)

    ref = reference_forward(params, x, kernel_size=ksize, padding=pad,
                            temprature=T, K=K)

    assert out.shape == (bs, cout, H, W), out.shape
    max_err = float(jnp.max(jnp.abs(out - ref)))
    # bf16 matmul operands / bf16 aggregated weights (fp32 accumulation).
    assert max_err < 5e-2, f"mismatch vs reference: max abs err {max_err}"
    print("KERNEL_OK")
</pallas_src>

<mosaic_0001>
module attributes {stable_mosaic.version = 11 : i64} {
  func.func @_aggregate_weight_kernel(%arg0: i32, %arg1: memref<2x8xf32, #tpu.memory_space<vmem>>, %arg2: memref<8x2304xbf16, #tpu.memory_space<vmem>>, %arg3: memref<2x2304xbf16, #tpu.memory_space<vmem>>) attributes {dimension_semantics = [#tpu.dimension_semantics<parallel>], iteration_bounds = array<i64: 1>, scalar_prefetch = 0 : i64, scratch_operands = 0 : i64, tpu.core_type = #tpu.core_type<tc>, window_params = [{pipeline_mode = #tpu.pipeline_mode<synchronous>, transform_indices = @transform_0, window_bounds = array<i64: 2, 8>}, {transform_indices = @transform_1, window_bounds = array<i64: 8, 2304>}, {transform_indices = @transform_2, window_bounds = array<i64: 2, 2304>}]} {
    %c0 = arith.constant 0 : index
    %c0_0 = arith.constant 0 : index
    %0 = vector.load %arg1[%c0, %c0_0] : memref<2x8xf32, #tpu.memory_space<vmem>>, vector<2x8xf32>
    %c0_1 = arith.constant 0 : index
    %c0_2 = arith.constant 0 : index
    %1 = vector.load %arg2[%c0_1, %c0_2] : memref<8x2304xbf16, #tpu.memory_space<vmem>>, vector<8x2304xbf16>
    %2 = arith.extf %1 : vector<8x2304xbf16> to vector<8x2304xf32>
    %cst = arith.constant dense<0.000000e+00> : vector<2x2304xf32>
    %3 = tpu.matmul %0, %2, %cst {dimension_numbers = #tpu.dot_dimension_numbers<[1], [0], [0], [1], [0, 0, 1, 1], [], []>} : vector<2x8xf32>, vector<8x2304xf32>, vector<2x2304xf32> -> vector<2x2304xf32>
    %4 = arith.truncf %3 : vector<2x2304xf32> to vector<2x2304xbf16>
    %c0_3 = arith.constant 0 : index
    %c0_4 = arith.constant 0 : index
    %5 = vector.load %arg3[%c0_3, %c0_4] : memref<2x2304xbf16, #tpu.memory_space<vmem>>, vector<2x2304xbf16>
    tpu.vector_store %arg3[%c0_3, %c0_4], %4 {strides = array<i32>} : memref<2x2304xbf16, #tpu.memory_space<vmem>>, vector<2x2304xbf16>,
    return
  }
  func.func @transform_0(%arg0: i32) -> (i32, i32) {
    %c0_i32 = arith.constant 0 : i32
    %c0_i32_0 = arith.constant 0 : i32
    %c0_i32_1 = arith.constant 0 : i32
    return %c0_i32, %c0_i32_0 : i32, i32
  }
  func.func @transform_1(%arg0: i32) -> (i32, i32) {
    %c0_i32 = arith.constant 0 : i32
    %c0_i32_0 = arith.constant 0 : i32
    return %c0_i32, %arg0 : i32, i32
  }
  func.func @transform_2(%arg0: i32) -> (i32, i32) {
    %c0_i32 = arith.constant 0 : i32
    %c0_i32_0 = arith.constant 0 : i32
    return %c0_i32, %arg0 : i32, i32
  }
}

</mosaic_0001>

<llo_original>
// kernel: tpu_custom_call.1
$region0: #{tpu_custom_call.1}
  #allocation0 [shape = 'u32[]', space=smem, size = 0x4, offset = 0x4, fixed_abs, tag = 'smem constant byte address 0x4 - core index']
  #allocation1 [shape = 'u32[72,128]{1,0:T(1,128)}', space=vmem, size = 0x9000, scoped, tag = 'internal scratch']
  %s0 = inlined_call_operand.hbm [shape: f32[2,8], index: 0, kind: input, shape index: {}]
  %s1 = inlined_call_operand.hbm [shape: bf16[8,2304], index: 1, kind: input, shape index: {}]
  %s2 = inlined_call_operand.hbm [shape: bf16[2,2304], index: 2, kind: output, shape index: {}]
  %s3 = sld [smem:[#allocation0]]
  $region26: #{tpu_custom_call.1} parent=0
    _
  %s5 = ssub.s32 1, %s3
  %s6 = scalar_select 0, %s5, %s3
  $region1: #{tpu_custom_call.1} parent=0
    #allocation2 [shape = 'u8[1024]{0}', space=vmem, size = 0x400, scoped, tag = 'input window, operand 0, single buffered']
    #allocation3 [shape = 's32[1]{0}', space=sflag, size = 0x4, scoped, tag = 'scoped memory for tpu_custom_call.1']
    #allocation4 [shape = 's32[1]{0}', space=sflag, size = 0x4, scoped, tag = 'scoped memory for tpu_custom_call.1']
    #allocation5 [shape = 'u8[36864]{0}', space=vmem, size = 0x9000, scoped, tag = 'input window, operand 1, single buffered']
    #allocation6 [shape = 's32[1]{0}', space=sflag, size = 0x4, scoped, tag = 'scoped memory for tpu_custom_call.1']
    #allocation7 [shape = 'u8[9216]{0}', space=vmem, size = 0x2400, scoped, tag = 'output window, operand 0, single buffered']
    %7 = vsyncpa [#allocation3], 0
    %8 = vsyncpa [#allocation6], 0
    %9 = vsyncpa [#allocation4], 0
    // Predicated region
    $region2: #{tpu_custom_call.1} parent=1 // pred_check
      _
    $region3: #{tpu_custom_call.1} parent=1 // pred_check_branch
      %11 = sbr.rel (0) target = $region5
    $region4: #{tpu_custom_call.1} parent=1 // pred_region
      %13 = vsyncadd [#allocation3], 0
      %s15 = sshll.u32 %s0, 4
      %s16 = int_to_ptr.hbm [resolvable:$true] %s15
      %s17 = sshll.u32 [#allocation2], 4
      %s18 = int_to_ptr.vmem [resolvable:$true] %s17
      %20 = dma.hbm_to_vmem [thread:$0]  %s16, 32, %s18, [#allocation3]
    $region5: #{tpu_custom_call.1} parent=1 // pred_fallthru
      _
    // Predicated region
    $region6: #{tpu_custom_call.1} parent=1 // pred_check
      _
    $region7: #{tpu_custom_call.1} parent=1 // pred_check_branch
      %22 = sbr.rel (0) target = $region9
    $region8: #{tpu_custom_call.1} parent=1 // pred_region
      %24 = vsyncadd [#allocation6], 0
      %s26 = sshll.u32 %s1, 4
      %s27 = int_to_ptr.hbm [resolvable:$true] %s26
      %s28 = sshll.u32 [#allocation5], 4
      %s29 = int_to_ptr.vmem [resolvable:$true] %s28
      %31 = dma.hbm_to_vmem [thread:$0]  %s27, 1152, %s29, [#allocation6]
    $region9: #{tpu_custom_call.1} parent=1 // pred_fallthru
      _
    // Predicated region
    $region10: #{tpu_custom_call.1} parent=1 // pred_check
      _
    $region11: #{tpu_custom_call.1} parent=1 // pred_check_branch
      %33 = sbr.rel (0) target = $region13
    $region12: #{tpu_custom_call.1} parent=1 // pred_region
      %35 = dma.done [#allocation3], 32
    $region13: #{tpu_custom_call.1} parent=1 // pred_fallthru
      _
    // Predicated region
    $region14: #{tpu_custom_call.1} parent=1 // pred_check
      _
    $region15: #{tpu_custom_call.1} parent=1 // pred_check_branch
      %37 = sbr.rel (0) target = $region17
    $region16: #{tpu_custom_call.1} parent=1 // pred_region
      %39 = dma.done [#allocation6], 1152
    $region17: #{tpu_custom_call.1} parent=1 // pred_fallthru
      _
    %v40 = vld [vmem:[#allocation2] sm:$0x3]
    %v41 = vld [vmem:[#allocation5] sm:$0xff]
    %v42 = vld [vmem:[#allocation5 + $0x8] sm:$0xff]
    %v43 = vld [vmem:[#allocation5 + $0x10] sm:$0xff]
    %v44 = vld [vmem:[#allocation5 + $0x18] sm:$0xff]
    %v45 = vld [vmem:[#allocation5 + $0x20] sm:$0xff]
    %v46 = vld [vmem:[#allocation5 + $0x28] sm:$0xff]
    %v47 = vld [vmem:[#allocation5 + $0x30] sm:$0xff]
    %v48 = vld [vmem:[#allocation5 + $0x38] sm:$0xff]
    %v49 = vld [vmem:[#allocation5 + $0x40] sm:$0xff]
    %v50 = vunpack.c.l.bf16 %v41
    %v51 = vunpack.c.h.bf16 %v41
    %v52 = vunpack.c.l.bf16 %v42
    %v53 = vunpack.c.h.bf16 %v42
    %v54 = vunpack.c.l.bf16 %v43
    %v55 = vunpack.c.h.bf16 %v43
    %v56 = vunpack.c.l.bf16 %v44
    %v57 = vunpack.c.h.bf16 %v44
    %v58 = vunpack.c.l.bf16 %v45
    %v59 = vunpack.c.h.bf16 %v45
    %v60 = vunpack.c.l.bf16 %v46
    %v61 = vunpack.c.h.bf16 %v46
    %v62 = vunpack.c.l.bf16 %v47
    %v63 = vunpack.c.h.bf16 %v47
    %v64 = vunpack.c.l.bf16 %v48
    %v65 = vunpack.c.h.bf16 %v48
    %v66 = vunpack.c.l.bf16 %v49
    %v67 = vunpack.c.h.bf16 %v49
    %vm68 = vcmask 64512
    %v70 = vsel %vm68, %v40, 0
    %72 = vmatpush.msra.mxu0 0.0
    %73 = vmatpush.msra.mxu0 0.0
    %74 = vmatpush.msra.mxu0 0.0
    %75 = vmatpush.msra.mxu0 0.0
    %76 = vmatpush.msra.mxu0 0.0
    %77 = vmatpush.msra.mxu0 0.0
    %78 = vmatpush.msra.mxu0 0.0
    %79 = vmatpush.msra.mxu0 0.0
    %80 = vmatpush.msra.mxu0 0.0
    %81 = vmatpush.msra.mxu0 0.0
    %82 = vmatpush.msra.mxu0 0.0
    %83 = vmatpush.msra.mxu0 0.0
    %84 = vmatpush.msra.mxu0 0.0
    %85 = vmatpush.msra.mxu0 0.0
    %86 = vmatpush.msra.mxu0 0.0
    %87 = vmatpush.msra.mxu0 %v50
    %88 = vmatmul.f32.gmra.mxu0 %v70
    %v89 = vpop.f32.mrf.mxu0
    %v90 = vadd.f32 0.0, %v89
    %91 = vdwg.mxu0
    %92 = vmatpush.msra.mxu0 0.0
    %93 = vmatpush.msra.mxu0 0.0
    %94 = vmatpush.msra.mxu0 0.0
    %95 = vmatpush.msra.mxu0 0.0
    %96 = vmatpush.msra.mxu0 0.0
    %97 = vmatpush.msra.mxu0 0.0
    %98 = vmatpush.msra.mxu0 0.0
    %99 = vmatpush.msra.mxu0 0.0
    %100 = vmatpush.msra.mxu0 0.0
    %101 = vmatpush.msra.mxu0 0.0
    %102 = vmatpush.msra.mxu0 0.0
    %103 = vmatpush.msra.mxu0 0.0
    %104 = vmatpush.msra.mxu0 0.0
    %105 = vmatpush.msra.mxu0 0.0
    %106 = vmatpush.msra.mxu0 0.0
    %107 = vmatpush.msra.mxu0 %v51
    %108 = vmatmul.f32.gmra.mxu0 %v70
    %v109 = vpop.f32.mrf.mxu0
    %v110 = vadd.f32 0.0, %v109
    %111 = vdwg.mxu0
    %112 = vmatpush.msra.mxu0 0.0
    %113 = vmatpush.msra.mxu0 0.0
    %114 = vmatpush.msra.mxu0 0.0
    %115 = vmatpush.msra.mxu0 0.0
    %116 = vmatpush.msra.mxu0 0.0
    %117 = vmatpush.msra.mxu0 0.0
    %118 = vmatpush.msra.mxu0 0.0
    %119 = vmatpush.msra.mxu0 0.0
    %120 = vmatpush.msra.mxu0 0.0
    %121 = vmatpush.msra.mxu0 0.0
    %122 = vmatpush.msra.mxu0 0.0
    %123 = vmatpush.msra.mxu0 0.0
    %124 = vmatpush.msra.mxu0 0.0
    %125 = vmatpush.msra.mxu0 0.0
    %126 = vmatpush.msra.mxu0 0.0
    %127 = vmatpush.msra.mxu0 %v52
    %128 = vmatmul.f32.gmra.mxu0 %v70
    %v129 = vpop.f32.mrf.mxu0
    %v130 = vadd.f32 0.0, %v129
    %131 = vdwg.mxu0
    %132 = vmatpush.msra.mxu0 0.0
    %133 = vmatpush.msra.mxu0 0.0
    %134 = vmatpush.msra.mxu0 0.0
    %135 = vmatpush.msra.mxu0 0.0
    %136 = vmatpush.msra.mxu0 0.0
    %137 = vmatpush.msra.mxu0 0.0
    %138 = vmatpush.msra.mxu0 0.0
    %139 = vmatpush.msra.mxu0 0.0
    %140 = vmatpush.msra.mxu0 0.0
    %141 = vmatpush.msra.mxu0 0.0
    %142 = vmatpush.msra.mxu0 0.0
    %143 = vmatpush.msra.mxu0 0.0
    %144 = vmatpush.msra.mxu0 0.0
    %145 = vmatpush.msra.mxu0 0.0
    %146 = vmatpush.msra.mxu0 0.0
    %147 = vmatpush.msra.mxu0 %v53
    %148 = vmatmul.f32.gmra.mxu0 %v70
    %v149 = vpop.f32.mrf.mxu0
    %v150 = vadd.f32 0.0, %v149
    %151 = vdwg.mxu0
    %152 = vmatpush.msra.mxu0 0.0
    %153 = vmatpush.msra.mxu0 0.0
    %154 = vmatpush.msra.mxu0 0.0
    %155 = vmatpush.msra.mxu0 0.0
    %156 = vmatpush.msra.mxu0 0.0
    %157 = vmatpush.msra.mxu0 0.0
    %158 = vmatpush.msra.mxu0 0.0
    %159 = vmatpush.msra.mxu0 0.0
    %160 = vmatpush.msra.mxu0 0.0
    %161 = vmatpush.msra.mxu0 0.0
    %162 = vmatpush.msra.mxu0 0.0
    %163 = vmatpush.msra.mxu0 0.0
    %164 = vmatpush.msra.mxu0 0.0
    %165 = vmatpush.msra.mxu0 0.0
    %166 = vmatpush.msra.mxu0 0.0
    %167 = vmatpush.msra.mxu0 %v54
    %168 = vmatmul.f32.gmra.mxu0 %v70
    %v169 = vpop.f32.mrf.mxu0
    %v170 = vadd.f32 0.0, %v169
    %171 = vdwg.mxu0
    %172 = vmatpush.msra.mxu0 0.0
    %173 = vmatpush.msra.mxu0 0.0
    %174 = vmatpush.msra.mxu0 0.0
    %175 = vmatpush.msra.mxu0 0.0
    %176 = vmatpush.msra.mxu0 0.0
    %177 = vmatpush.msra.mxu0 0.0
    %178 = vmatpush.msra.mxu0 0.0
    %179 = vmatpush.msra.mxu0 0.0
    %180 = vmatpush.msra.mxu0 0.0
    %181 = vmatpush.msra.mxu0 0.0
    %182 = vmatpush.msra.mxu0 0.0
    %183 = vmatpush.msra.mxu0 0.0
    %184 = vmatpush.msra.mxu0 0.0
    %185 = vmatpush.msra.mxu0 0.0
    %186 = vmatpush.msra.mxu0 0.0
    %187 = vmatpush.msra.mxu0 %v55
    %188 = vmatmul.f32.gmra.mxu0 %v70
    %v189 = vpop.f32.mrf.mxu0
    %v190 = vadd.f32 0.0, %v189
    %191 = vdwg.mxu0
    %192 = vmatpush.msra.mxu0 0.0
    %193 = vmatpush.msra.mxu0 0.0
    %194 = vmatpush.msra.mxu0 0.0
    %195 = vmatpush.msra.mxu0 0.0
    %196 = vmatpush.msra.mxu0 0.0
    %197 = vmatpush.msra.mxu0 0.0
    %198 = vmatpush.msra.mxu0 0.0
    %199 = vmatpush.msra.mxu0 0.0
    %200 = vmatpush.msra.mxu0 0.0
    %201 = vmatpush.msra.mxu0 0.0
    %202 = vmatpush.msra.mxu0 0.0
    %203 = vmatpush.msra.mxu0 0.0
    %204 = vmatpush.msra.mxu0 0.0
    %205 = vmatpush.msra.mxu0 0.0
    %206 = vmatpush.msra.mxu0 0.0
    %207 = vmatpush.msra.mxu0 %v56
    %208 = vmatmul.f32.gmra.mxu0 %v70
    %v209 = vpop.f32.mrf.mxu0
    %v210 = vadd.f32 0.0, %v209
    %211 = vdwg.mxu0
    %212 = vmatpush.msra.mxu0 0.0
    %213 = vmatpush.msra.mxu0 0.0
    %214 = vmatpush.msra.mxu0 0.0
    %215 = vmatpush.msra.mxu0 0.0
    %216 = vmatpush.msra.mxu0 0.0
    %217 = vmatpush.msra.mxu0 0.0
    %218 = vmatpush.msra.mxu0 0.0
    %219 = vmatpush.msra.mxu0 0.0
    %220 = vmatpush.msra.mxu0 0.0
    %221 = vmatpush.msra.mxu0 0.0
    %222 = vmatpush.msra.mxu0 0.0
    %223 = vmatpush.msra.mxu0 0.0
    %224 = vmatpush.msra.mxu0 0.0
    %225 = vmatpush.msra.mxu0 0.0
    %226 = vmatpush.msra.mxu0 0.0
    %227 = vmatpush.msra.mxu0 %v57
    %228 = vmatmul.f32.gmra.mxu0 %v70
    %v229 = vpop.f32.mrf.mxu0
    %v230 = vadd.f32 0.0, %v229
    %231 = vdwg.mxu0
    %232 = vmatpush.msra.mxu0 0.0
    %233 = vmatpush.msra.mxu0 0.0
    %234 = vmatpush.msra.mxu0 0.0
    %235 = vmatpush.msra.mxu0 0.0
    %236 = vmatpush.msra.mxu0 0.0
    %237 = vmatpush.msra.mxu0 0.0
    %238 = vmatpush.msra.mxu0 0.0
    %239 = vmatpush.msra.mxu0 0.0
    %240 = vmatpush.msra.mxu0 0.0
    %241 = vmatpush.msra.mxu0 0.0
    %242 = vmatpush.msra.mxu0 0.0
    %243 = vmatpush.msra.mxu0 0.0
    %244 = vmatpush.msra.mxu0 0.0
    %245 = vmatpush.msra.mxu0 0.0
    %246 = vmatpush.msra.mxu0 0.0
    %247 = vmatpush.msra.mxu0 %v58
    %248 = vmatmul.f32.gmra.mxu0 %v70
    %v249 = vpop.f32.mrf.mxu0
    %v250 = vadd.f32 0.0, %v249
    %251 = vdwg.mxu0
    %252 = vmatpush.msra.mxu0 0.0
    %253 = vmatpush.msra.mxu0 0.0
    %254 = vmatpush.msra.mxu0 0.0
    %255 = vmatpush.msra.mxu0 0.0
    %256 = vmatpush.msra.mxu0 0.0
    %257 = vmatpush.msra.mxu0 0.0
    %258 = vmatpush.msra.mxu0 0.0
    %259 = vmatpush.msra.mxu0 0.0
    %260 = vmatpush.msra.mxu0 0.0
    %261 = vmatpush.msra.mxu0 0.0
    %262 = vmatpush.msra.mxu0 0.0
    %263 = vmatpush.msra.mxu0 0.0
    %264 = vmatpush.msra.mxu0 0.0
    %265 = vmatpush.msra.mxu0 0.0
    %266 = vmatpush.msra.mxu0 0.0
    %267 = vmatpush.msra.mxu0 %v59
    %268 = vmatmul.f32.gmra.mxu0 %v70
    %v269 = vpop.f32.mrf.mxu0
    %v270 = vadd.f32 0.0, %v269
    %271 = vdwg.mxu0
    %272 = vmatpush.msra.mxu0 0.0
    %273 = vmatpush.msra.mxu0 0.0
    %274 = vmatpush.msra.mxu0 0.0
    %275 = vmatpush.msra.mxu0 0.0
    %276 = vmatpush.msra.mxu0 0.0
    %277 = vmatpush.msra.mxu0 0.0
    %278 = vmatpush.msra.mxu0 0.0
    %279 = vmatpush.msra.mxu0 0.0
    %280 = vmatpush.msra.mxu0 0.0
    %281 = vmatpush.msra.mxu0 0.0
    %282 = vmatpush.msra.mxu0 0.0
    %283 = vmatpush.msra.mxu0 0.0
    %284 = vmatpush.msra.mxu0 0.0
    %285 = vmatpush.msra.mxu0 0.0
    %286 = vmatpush.msra.mxu0 0.0
    %287 = vmatpush.msra.mxu0 %v60
    %288 = vmatmul.f32.gmra.mxu0 %v70
    %v289 = vpop.f32.mrf.mxu0
    %v290 = vadd.f32 0.0, %v289
    %291 = vdwg.mxu0
    %292 = vmatpush.msra.mxu0 0.0
    %293 = vmatpush.msra.mxu0 0.0
    %294 = vmatpush.msra.mxu0 0.0
    %295 = vmatpush.msra.mxu0 0.0
    %296 = vmatpush.msra.mxu0 0.0
    %297 = vmatpush.msra.mxu0 0.0
    %298 = vmatpush.msra.mxu0 0.0
    %299 = vmatpush.msra.mxu0 0.0
    %300 = vmatpush.msra.mxu0 0.0
    %301 = vmatpush.msra.mxu0 0.0
    %302 = vmatpush.msra.mxu0 0.0
    %303 = vmatpush.msra.mxu0 0.0
    %304 = vmatpush.msra.mxu0 0.0
    %305 = vmatpush.msra.mxu0 0.0
    %306 = vmatpush.msra.mxu0 0.0
    %307 = vmatpush.msra.mxu0 %v61
    %308 = vmatmul.f32.gmra.mxu0 %v70
    %v309 = vpop.f32.mrf.mxu0
    %v310 = vadd.f32 0.0, %v309
    %311 = vdwg.mxu0
    %312 = vmatpush.msra.mxu0 0.0
    %313 = vmatpush.msra.mxu0 0.0
    %314 = vmatpush.msra.mxu0 0.0
    %315 = vmatpush.msra.mxu0 0.0
    %316 = vmatpush.msra.mxu0 0.0
    %317 = vmatpush.msra.mxu0 0.0
    %318 = vmatpush.msra.mxu0 0.0
    %319 = vmatpush.msra.mxu0 0.0
    %320 = vmatpush.msra.mxu0 0.0
    %321 = vmatpush.msra.mxu0 0.0
    %322 = vmatpush.msra.mxu0 0.0
    %323 = vmatpush.msra.mxu0 0.0
    %324 = vmatpush.msra.mxu0 0.0
    %325 = vmatpush.msra.mxu0 0.0
    %326 = vmatpush.msra.mxu0 0.0
    %327 = vmatpush.msra.mxu0 %v62
    %328 = vmatmul.f32.gmra.mxu0 %v70
    %v329 = vpop.f32.mrf.mxu0
    %v330 = vadd.f32 0.0, %v329
    %331 = vdwg.mxu0
    %332 = vmatpush.msra.mxu0 0.0
    %333 = vmatpush.msra.mxu0 0.0
    %334 = vmatpush.msra.mxu0 0.0
    %335 = vmatpush.msra.mxu0 0.0
    %336 = vmatpush.msra.mxu0 0.0
    %337 = vmatpush.msra.mxu0 0.0
    %338 = vmatpush.msra.mxu0 0.0
    %339 = vmatpush.msra.mxu0 0.0
    %340 = vmatpush.msra.mxu0 0.0
    %341 = vmatpush.msra.mxu0 0.0
    %342 = vmatpush.msra.mxu0 0.0
    %343 = vmatpush.msra.mxu0 0.0
    %344 = vmatpush.msra.mxu0 0.0
    %345 = vmatpush.msra.mxu0 0.0
    %346 = vmatpush.msra.mxu0 0.0
    %347 = vmatpush.msra.mxu0 %v63
    %348 = vmatmul.f32.gmra.mxu0 %v70
    %v349 = vpop.f32.mrf.mxu0
    %v350 = vadd.f32 0.0, %v349
    %351 = vdwg.mxu0
    %352 = vmatpush.msra.mxu0 0.0
    %353 = vmatpush.msra.mxu0 0.0
    %354 = vmatpush.msra.mxu0 0.0
    %355 = vmatpush.msra.mxu0 0.0
    %356 = vmatpush.msra.mxu0 0.0
    %357 = vmatpush.msra.mxu0 0.0
    %358 = vmatpush.msra.mxu0 0.0
    %359 = vmatpush.msra.mxu0 0.0
    %360 = vmatpush.msra.mxu0 0.0
    %361 = vmatpush.msra.mxu0 0.0
    %362 = vmatpush.msra.mxu0 0.0
    %363 = vmatpush.msra.mxu0 0.0
    %364 = vmatpush.msra.mxu0 0.0
    %365 = vmatpush.msra.mxu0 0.0
    %366 = vmatpush.msra.mxu0 0.0
    %367 = vmatpush.msra.mxu0 %v64
    %368 = vmatmul.f32.gmra.mxu0 %v70
    %v369 = vpop.f32.mrf.mxu0
    %v370 = vadd.f32 0.0, %v369
    %371 = vdwg.mxu0
    %372 = vmatpush.msra.mxu0 0.0
    %373 = vmatpush.msra.mxu0 0.0
    %374 = vmatpush.msra.mxu0 0.0
    %375 = vmatpush.msra.mxu0 0.0
    %376 = vmatpush.msra.mxu0 0.0
    %377 = vmatpush.msra.mxu0 0.0
    %378 = vmatpush.msra.mxu0 0.0
    %379 = vmatpush.msra.mxu0 0.0
    %380 = vmatpush.msra.mxu0 0.0
    %381 = vmatpush.msra.mxu0 0.0
    %382 = vmatpush.msra.mxu0 0.0
    %383 = vmatpush.msra.mxu0 0.0
    %384 = vmatpush.msra.mxu0 0.0
    %385 = vmatpush.msra.mxu0 0.0
    %386 = vmatpush.msra.mxu0 0.0
    %387 = vmatpush.msra.mxu0 %v65
    %388 = vmatmul.f32.gmra.mxu0 %v70
    %v389 = vpop.f32.mrf.mxu0
    %v390 = vadd.f32 0.0, %v389
    %391 = vdwg.mxu0
    %392 = vmatpush.msra.mxu0 0.0
    %393 = vmatpush.msra.mxu0 0.0
    %394 = vmatpush.msra.mxu0 0.0
    %395 = vmatpush.msra.mxu0 0.0
    %396 = vmatpush.msra.mxu0 0.0
    %397 = vmatpush.msra.mxu0 0.0
    %398 = vmatpush.msra.mxu0 0.0
    %399 = vmatpush.msra.mxu0 0.0
    %400 = vmatpush.msra.mxu0 0.0
    %401 = vmatpush.msra.mxu0 0.0
    %402 = vmatpush.msra.mxu0 0.0
    %403 = vmatpush.msra.mxu0 0.0
    %404 = vmatpush.msra.mxu0 0.0
    %405 = vmatpush.msra.mxu0 0.0
    %406 = vmatpush.msra.mxu0 0.0
    %407 = vmatpush.msra.mxu0 %v66
    %408 = vmatmul.f32.gmra.mxu0 %v70
    %v409 = vpop.f32.mrf.mxu0
    %v410 = vadd.f32 0.0, %v409
    %411 = vdwg.mxu0
    %412 = vmatpush.msra.mxu0 0.0
    %413 = vmatpush.msra.mxu0 0.0
    %414 = vmatpush.msra.mxu0 0.0
    %415 = vmatpush.msra.mxu0 0.0
    %416 = vmatpush.msra.mxu0 0.0
    %417 = vmatpush.msra.mxu0 0.0
    %418 = vmatpush.msra.mxu0 0.0
    %419 = vmatpush.msra.mxu0 0.0
    %420 = vmatpush.msra.mxu0 0.0
    %421 = vmatpush.msra.mxu0 0.0
    %422 = vmatpush.msra.mxu0 0.0
    %423 = vmatpush.msra.mxu0 0.0
    %424 = vmatpush.msra.mxu0 0.0
    %425 = vmatpush.msra.mxu0 0.0
    %426 = vmatpush.msra.mxu0 0.0
    %427 = vmatpush.msra.mxu0 %v67
    %428 = vmatmul.f32.gmra.mxu0 %v70
    %v429 = vpop.f32.mrf.mxu0
    %v430 = vadd.f32 0.0, %v429
    %431 = vdwg.mxu0
    %v432 = vpack.c.bf16 %v110, %v90
    %v433 = vpack.c.bf16 %v150, %v130
    %v434 = vpack.c.bf16 %v190, %v170
    %v435 = vpack.c.bf16 %v230, %v210
    %v436 = vpack.c.bf16 %v270, %v250
    %v437 = vpack.c.bf16 %v310, %v290
    %v438 = vpack.c.bf16 %v350, %v330
    %v439 = vpack.c.bf16 %v390, %v370
    %v440 = vpack.c.bf16 %v430, %v410
    %v450 = vrot.slane %v432, 3
    %v451 = vrot.slane %v433, 6
    %v452 = vrot.slane %v433, 1
    %v453 = vrot.slane %v434, 4
    %v454 = vrot.slane %v434, 7
    %v455 = vrot.slane %v435, 2
    %v456 = vrot.slane %v435, 5
    %v457 = vrot.slane %v436, 3
    %v458 = vrot.slane %v437, 6
    %v459 = vrot.slane %v437, 1
    %v460 = vrot.slane %v438, 4
    %v461 = vrot.slane %v438, 7
    %v462 = vrot.slane %v439, 2
    %v463 = vrot.slane %v439, 5
    %v464 = vrot.slane %v440, 3
    %vm465 = vcmask 1040384
    %v468 = vsel %vm465, %v432, %v450
    %vm469 = vcmask 1042434
    %v472 = vsel %vm469, %v451, %v452
    %vm473 = vcmask 1041408
    %v474 = vsel %vm473, %v468, %v472
    %vm475 = vcmask 1044484
    %v478 = vsel %vm475, %v453, %v454
    %vm479 = vcmask 1046534
    %v482 = vsel %vm479, %v455, %v456
    %vm483 = vcmask 1045508
    %v484 = vsel %vm483, %v478, %v482
    %vm485 = vcmask 1043456
    %v486 = vsel %vm485, %v474, %v484
    %v489 = vsel %vm465, %v436, %v457
    %v492 = vsel %vm469, %v458, %v459
    %v493 = vsel %vm473, %v489, %v492
    %v496 = vsel %vm475, %v460, %v461
    %v499 = vsel %vm479, %v462, %v463
    %v500 = vsel %vm483, %v496, %v499
    %v501 = vsel %vm485, %v493, %v500
    %v504 = vsel %vm465, %v440, %v464
    %508 = vst [vmem:[#allocation7] sm:$0xff] %v486
    %509 = vst [vmem:[#allocation7 + $0x8] sm:$0xff] %v501
    %510 = vst [vmem:[#allocation7 + $0x10] sm:$0x3] %v504
    // Predicated region
    $region18: #{tpu_custom_call.1} parent=1 // pred_check
      _
    $region19: #{tpu_custom_call.1} parent=1 // pred_check_branch
      %512 = sbr.rel (0) target = $region21
    $region20: #{tpu_custom_call.1} parent=1 // pred_region
      %514 = vsyncadd [#allocation4], 0
      %s516 = sshll.u32 [#allocation7], 4
      %s517 = int_to_ptr.vmem [resolvable:$true] %s516
      %s518 = sshll.u32 %s2, 4
      %s519 = int_to_ptr.hbm [resolvable:$true] %s518
      %521 = dma.vmem_to_hbm [thread:$0]  %s517, 288, %s519, [#allocation4]
    $region21: #{tpu_custom_call.1} parent=1 // pred_fallthru
      _
    // Predicated region
    $region22: #{tpu_custom_call.1} parent=1 // pred_check
      _
    $region23: #{tpu_custom_call.1} parent=1 // pred_check_branch
      %523 = sbr.rel (0) target = $region25
    $region24: #{tpu_custom_call.1} parent=1 // pred_region
      %525 = dma.done [#allocation4], 288
    $region25: #{tpu_custom_call.1} parent=1 // pred_fallthru
      _
    %526 = vsyncpa [#allocation3], 1
    %527 = vsyncpa [#allocation6], 1
    %528 = vsyncpa [#allocation4], 1

</llo_original>
